<compile_context>
chip_gen: v7x
topology: tpu7x:2x2x1
jax: 0.10.0
libtpu: 0.0.40
codegen_flags: <defaults>
</compile_context>

<pallas_src>
import functools

import jax
import jax.numpy as jnp
from jax.experimental import pallas as pl
from jax.experimental.pallas import tpu as pltpu


def _sigmoid(x):
    # exp + approx reciprocal both land on the EUP slot; avoids the exact
    # divide's Newton iterations on the already-busy VALU.
    return pl.reciprocal(1.0 + jnp.exp(-x), approx=True)


def ml3_kernel(slab_ref, gT_ref, out_ref, acc_ref, *, r1, r2, r3, r_max):
    # slab_ref: (3*r_max, tb) bf16  rows: [u^T ; v^T ; w^T], each mode padded to r_max
    # gT_ref:   (r2*r3, r1)   f32   core tensor, flattened + transposed (tiny)
    # out_ref:  (1, tb)       f32   lane-dense prediction row
    # acc_ref:  (r3, tb)      f32   VMEM accumulator (caps vreg live range vs. tb)
    u_f = slab_ref[0:r1, :].astype(jnp.float32)               # (r1, tb)

    # x = sigmoid(G^T @ u^T), consumed j-slice by j-slice so only (r3, tb)
    # is ever live; acc kept in VMEM. r2 is small & static -> fully unrolled.
    for j in range(r2):
        xj = jnp.dot(gT_ref[j * r3:(j + 1) * r3, :], u_f,
                     preferred_element_type=jnp.float32)      # (r3, tb), MXU
        xj = _sigmoid(xj)
        vj = slab_ref[r_max + j:r_max + j + 1, :].astype(jnp.float32)  # (1, tb)
        term = vj * xj
        if j == 0:
            acc_ref[...] = term                                # no zero-fill pass
        else:
            acc_ref[...] = acc_ref[...] + term

    g_mat = _sigmoid(acc_ref[...])                             # (r3, tb)

    # pred[b] = sum_k w[k, b] * g_mat[k, b]  -> lane-dense (1, tb) store.
    w_f = slab_ref[2 * r_max:2 * r_max + r3, :].astype(jnp.float32)
    out_ref[...] = jnp.sum(w_f * g_mat, axis=0, keepdims=True)


def _multi_mode_dot(core, mats):
    # mats[m] has shape [new_m, old_m]; tensorly-style mode-m products.
    x = core
    for m, mat in enumerate(mats):
        x = jnp.moveaxis(jnp.tensordot(mat, x, axes=([1], [m])), 0, m)
    return x


def ml3_forward(u_idx, v_idx, w_idx, params, core_shape, tb=2048):
    r1, r2, r3 = core_shape
    r_max = max(r1, r2, r3)

    # --- tiny glue: dense core tensor G via two Tucker mode-products --------
    G2 = _multi_mode_dot(params["G1"], [params["U1"], params["V1"], params["W1"]])
    G = _multi_mode_dot(G2, [params["U2"], params["V2"], params["W2"]])
    gT = G.reshape(r1, r2 * r3).T.astype(jnp.float32)          # (r2*r3, r1), kept f32

    # --- glue: lane-major bf16 gathers packed into ONE (3*r_max, Bp) slab ---
    # Tables are pre-transposed + bf16-cast once (tiny), then gathered along
    # the LANE axis so no full-slab transpose / f32 pass is materialized.
    B = u_idx.shape[0]
    Bp = pl.cdiv(B, tb) * tb
    pad = Bp - B

    def rows(table, idx, r):                                   # -> (r_max, Bp) bf16
        t = table.T.astype(jnp.bfloat16)                       # (r, d), tiny
        g = jnp.take(t, jnp.pad(idx, (0, pad)), axis=1)        # (r, Bp), batch on lanes
        return jnp.pad(g, ((0, r_max - r), (0, 0)))

    slab = jnp.concatenate(
        [rows(params["U"], u_idx, r1),
         rows(params["V"], v_idx, r2),
         rows(params["W"], w_idx, r3)],
        axis=0)                                                # (3*r_max, Bp) bf16

    kernel = functools.partial(ml3_kernel, r1=r1, r2=r2, r3=r3, r_max=r_max)
    out = pl.pallas_call(
        kernel,
        out_shape=jax.ShapeDtypeStruct((1, Bp), jnp.float32),
        grid_spec=pltpu.PrefetchScalarGridSpec(
            num_scalar_prefetch=0,
            grid=(Bp // tb,),
            in_specs=[
                pl.BlockSpec((3 * r_max, tb), lambda i: (0, i)),
                pl.BlockSpec((r2 * r3, r1), lambda i: (0, 0)),   # full tiny array
            ],
            out_specs=pl.BlockSpec((1, tb), lambda i: (0, i)),
            scratch_shapes=[pltpu.VMEM((r3, tb), jnp.float32)],
        ),
        compiler_params=pltpu.CompilerParams(
            dimension_semantics=("parallel",)),
    )(slab, gT)
    return out[0, :B]                                          # (B,), matches torch.squeeze


def init_params(key, data_shape, core_shape, core2_shape, core3_shape):
    d1, d2, d3 = data_shape
    r1, r2, r3 = core_shape
    s1, s2, s3 = core2_shape
    t1, t2, t3 = core3_shape
    keys = jax.random.split(key, 10)

    def xavier(k, fan_out, fan_in):  # torch xavier_normal_ on an embedding table
        std = (2.0 / (fan_in + fan_out)) ** 0.5
        return std * jax.random.normal(k, (fan_out, fan_in), jnp.float32)

    return {
        "U1": xavier(keys[0], s1, t1),
        "V1": xavier(keys[1], s2, t2),
        "W1": xavier(keys[2], s3, t3),
        "G1": jax.random.uniform(keys[3], (t1, t2, t3), jnp.float32, -1.0, 1.0),
        "U2": xavier(keys[4], r1, s1),
        "V2": xavier(keys[5], r2, s2),
        "W2": xavier(keys[6], r3, s3),
        "U": xavier(keys[7], d1, r1),
        "V": xavier(keys[8], d2, r2),
        "W": xavier(keys[9], d3, r3),
    }


def _reference(u_idx, v_idx, w_idx, params, core_shape):
    r1, r2, r3 = core_shape
    G2 = _multi_mode_dot(params["G1"], [params["U1"], params["V1"], params["W1"]])
    G = _multi_mode_dot(G2, [params["U2"], params["V2"], params["W2"]])
    u = jnp.take(params["U"], u_idx, axis=0)
    v = jnp.take(params["V"], v_idx, axis=0)
    w = jnp.take(params["W"], w_idx, axis=0)
    x = jax.nn.sigmoid(u @ G.reshape(r1, r2 * r3)).reshape(-1, r2, r3)
    g_mat = jax.nn.sigmoid(jnp.einsum("bj,bjk->bk", v, x))
    return jnp.einsum("bk,bk->b", w, g_mat)


if __name__ == "__main__":
    data_shape = (10, 12, 14)
    core_shape = (8, 8, 8)
    core2_shape = (6, 6, 6)
    core3_shape = (4, 4, 4)
    B = 600          # pads to 768 at tb=256 -> 3 grid steps (tiling, padding, megacore)
    tb = 256

    key = jax.random.PRNGKey(0)
    pkey, k1, k2, k3 = jax.random.split(key, 4)
    params = init_params(pkey, data_shape, core_shape, core2_shape, core3_shape)

    u_idx = jax.random.randint(k1, (B,), 0, data_shape[0], dtype=jnp.int32)
    v_idx = jax.random.randint(k2, (B,), 0, data_shape[1], dtype=jnp.int32)
    w_idx = jax.random.randint(k3, (B,), 0, data_shape[2], dtype=jnp.int32)

    pred = ml3_forward(u_idx, v_idx, w_idx, params, core_shape, tb=tb)
    pred = jax.block_until_ready(pred)

    ref = _reference(u_idx, v_idx, w_idx, params, core_shape)
    assert pred.shape == (B,)
    # bf16 embedding slab + approx reciprocal (f32 accumulation, f32 core) ->
    # loosened tolerance per review guidance.
    assert jnp.allclose(pred, ref, atol=2e-2, rtol=2e-2)
    print("KERNEL_OK")
</pallas_src>

<mosaic_0001>
module attributes {stable_mosaic.version = 11 : i64} {
  func.func @ml3_kernel(%arg0: i32, %arg1: memref<24x256xbf16, #tpu.memory_space<vmem>>, %arg2: memref<64x8xf32, #tpu.memory_space<vmem>>, %arg3: memref<1x256xf32, #tpu.memory_space<vmem>>, %arg4: memref<8x256xf32, #tpu.memory_space<vmem>>) attributes {dimension_semantics = [#tpu.dimension_semantics<parallel>], iteration_bounds = array<i64: 3>, scalar_prefetch = 0 : i64, scratch_operands = 1 : i64, tpu.core_type = #tpu.core_type<tc>, window_params = [{transform_indices = @transform_0, window_bounds = array<i64: 24, 256>}, {pipeline_mode = #tpu.pipeline_mode<synchronous>, transform_indices = @transform_1, window_bounds = array<i64: 64, 8>}, {transform_indices = @transform_2, window_bounds = array<i64: 1, 256>}]} {
    %c0 = arith.constant 0 : index
    %c0_0 = arith.constant 0 : index
    %0 = vector.load %arg1[%c0, %c0_0] : memref<24x256xbf16, #tpu.memory_space<vmem>>, vector<8x256xbf16>
    %1 = arith.extf %0 : vector<8x256xbf16> to vector<8x256xf32>
    %c0_1 = arith.constant 0 : index
    %c0_2 = arith.constant 0 : index
    %2 = vector.load %arg2[%c0_1, %c0_2] : memref<64x8xf32, #tpu.memory_space<vmem>>, vector<8x8xf32>
    %cst = arith.constant dense<0.000000e+00> : vector<8x256xf32>
    %3 = tpu.matmul %2, %1, %cst {dimension_numbers = #tpu.dot_dimension_numbers<[1], [0], [0], [1], [0, 0, 1, 1], [], []>} : vector<8x8xf32>, vector<8x256xf32>, vector<8x256xf32> -> vector<8x256xf32>
    %cst_3 = arith.constant 0.000000e+00 : f32
    %4 = vector.broadcast %cst_3 : f32 to vector<8x256xf32>
    %5 = arith.subf %4, %3 : vector<8x256xf32>
    %6 = math.exp %5 : vector<8x256xf32>
    %cst_4 = arith.constant 1.000000e+00 : f32
    %7 = vector.broadcast %cst_4 : f32 to vector<8x256xf32>
    %8 = arith.addf %7, %6 : vector<8x256xf32>
    %9 = tpu.reciprocal %8 {approx = true} : vector<8x256xf32> -> vector<8x256xf32>
    %c8 = arith.constant 8 : index
    %c0_5 = arith.constant 0 : index
    %10 = vector.load %arg1[%c8, %c0_5] : memref<24x256xbf16, #tpu.memory_space<vmem>>, vector<1x256xbf16>
    %11 = arith.extf %10 : vector<1x256xbf16> to vector<1x256xf32>
    %12 = vector.broadcast %11 : vector<1x256xf32> to vector<8x256xf32>
    %13 = arith.mulf %12, %9 : vector<8x256xf32>
    %c0_6 = arith.constant 0 : index
    %c0_7 = arith.constant 0 : index
    %14 = vector.load %arg4[%c0_6, %c0_7] : memref<8x256xf32, #tpu.memory_space<vmem>>, vector<8x256xf32>
    tpu.vector_store %arg4[%c0_6, %c0_7], %13 {strides = array<i32>} : memref<8x256xf32, #tpu.memory_space<vmem>>, vector<8x256xf32>,
    %c8_8 = arith.constant 8 : index
    %c0_9 = arith.constant 0 : index
    %15 = vector.load %arg2[%c8_8, %c0_9] : memref<64x8xf32, #tpu.memory_space<vmem>>, vector<8x8xf32>
    %cst_10 = arith.constant dense<0.000000e+00> : vector<8x256xf32>
    %16 = tpu.matmul %15, %1, %cst_10 {dimension_numbers = #tpu.dot_dimension_numbers<[1], [0], [0], [1], [0, 0, 1, 1], [], []>} : vector<8x8xf32>, vector<8x256xf32>, vector<8x256xf32> -> vector<8x256xf32>
    %cst_11 = arith.constant 0.000000e+00 : f32
    %17 = vector.broadcast %cst_11 : f32 to vector<8x256xf32>
    %18 = arith.subf %17, %16 : vector<8x256xf32>
    %19 = math.exp %18 : vector<8x256xf32>
    %cst_12 = arith.constant 1.000000e+00 : f32
    %20 = vector.broadcast %cst_12 : f32 to vector<8x256xf32>
    %21 = arith.addf %20, %19 : vector<8x256xf32>
    %22 = tpu.reciprocal %21 {approx = true} : vector<8x256xf32> -> vector<8x256xf32>
    %c9 = arith.constant 9 : index
    %c0_13 = arith.constant 0 : index
    %23 = vector.load %arg1[%c9, %c0_13] : memref<24x256xbf16, #tpu.memory_space<vmem>>, vector<1x256xbf16>
    %24 = arith.extf %23 : vector<1x256xbf16> to vector<1x256xf32>
    %25 = vector.broadcast %24 : vector<1x256xf32> to vector<8x256xf32>
    %26 = arith.mulf %25, %22 : vector<8x256xf32>
    %c0_14 = arith.constant 0 : index
    %c0_15 = arith.constant 0 : index
    %27 = vector.load %arg4[%c0_14, %c0_15] : memref<8x256xf32, #tpu.memory_space<vmem>>, vector<8x256xf32>
    %28 = arith.addf %27, %26 : vector<8x256xf32>
    %c0_16 = arith.constant 0 : index
    %c0_17 = arith.constant 0 : index
    %29 = vector.load %arg4[%c0_16, %c0_17] : memref<8x256xf32, #tpu.memory_space<vmem>>, vector<8x256xf32>
    tpu.vector_store %arg4[%c0_16, %c0_17], %28 {strides = array<i32>} : memref<8x256xf32, #tpu.memory_space<vmem>>, vector<8x256xf32>,
    %c16 = arith.constant 16 : index
    %c0_18 = arith.constant 0 : index
    %30 = vector.load %arg2[%c16, %c0_18] : memref<64x8xf32, #tpu.memory_space<vmem>>, vector<8x8xf32>
    %cst_19 = arith.constant dense<0.000000e+00> : vector<8x256xf32>
    %31 = tpu.matmul %30, %1, %cst_19 {dimension_numbers = #tpu.dot_dimension_numbers<[1], [0], [0], [1], [0, 0, 1, 1], [], []>} : vector<8x8xf32>, vector<8x256xf32>, vector<8x256xf32> -> vector<8x256xf32>
    %cst_20 = arith.constant 0.000000e+00 : f32
    %32 = vector.broadcast %cst_20 : f32 to vector<8x256xf32>
    %33 = arith.subf %32, %31 : vector<8x256xf32>
    %34 = math.exp %33 : vector<8x256xf32>
    %cst_21 = arith.constant 1.000000e+00 : f32
    %35 = vector.broadcast %cst_21 : f32 to vector<8x256xf32>
    %36 = arith.addf %35, %34 : vector<8x256xf32>
    %37 = tpu.reciprocal %36 {approx = true} : vector<8x256xf32> -> vector<8x256xf32>
    %c10 = arith.constant 10 : index
    %c0_22 = arith.constant 0 : index
    %38 = vector.load %arg1[%c10, %c0_22] : memref<24x256xbf16, #tpu.memory_space<vmem>>, vector<1x256xbf16>
    %39 = arith.extf %38 : vector<1x256xbf16> to vector<1x256xf32>
    %40 = vector.broadcast %39 : vector<1x256xf32> to vector<8x256xf32>
    %41 = arith.mulf %40, %37 : vector<8x256xf32>
    %c0_23 = arith.constant 0 : index
    %c0_24 = arith.constant 0 : index
    %42 = vector.load %arg4[%c0_23, %c0_24] : memref<8x256xf32, #tpu.memory_space<vmem>>, vector<8x256xf32>
    %43 = arith.addf %42, %41 : vector<8x256xf32>
    %c0_25 = arith.constant 0 : index
    %c0_26 = arith.constant 0 : index
    %44 = vector.load %arg4[%c0_25, %c0_26] : memref<8x256xf32, #tpu.memory_space<vmem>>, vector<8x256xf32>
    tpu.vector_store %arg4[%c0_25, %c0_26], %43 {strides = array<i32>} : memref<8x256xf32, #tpu.memory_space<vmem>>, vector<8x256xf32>,
    %c24 = arith.constant 24 : index
    %c0_27 = arith.constant 0 : index
    %45 = vector.load %arg2[%c24, %c0_27] : memref<64x8xf32, #tpu.memory_space<vmem>>, vector<8x8xf32>
    %cst_28 = arith.constant dense<0.000000e+00> : vector<8x256xf32>
    %46 = tpu.matmul %45, %1, %cst_28 {dimension_numbers = #tpu.dot_dimension_numbers<[1], [0], [0], [1], [0, 0, 1, 1], [], []>} : vector<8x8xf32>, vector<8x256xf32>, vector<8x256xf32> -> vector<8x256xf32>
    %cst_29 = arith.constant 0.000000e+00 : f32
    %47 = vector.broadcast %cst_29 : f32 to vector<8x256xf32>
    %48 = arith.subf %47, %46 : vector<8x256xf32>
    %49 = math.exp %48 : vector<8x256xf32>
    %cst_30 = arith.constant 1.000000e+00 : f32
    %50 = vector.broadcast %cst_30 : f32 to vector<8x256xf32>
    %51 = arith.addf %50, %49 : vector<8x256xf32>
    %52 = tpu.reciprocal %51 {approx = true} : vector<8x256xf32> -> vector<8x256xf32>
    %c11 = arith.constant 11 : index
    %c0_31 = arith.constant 0 : index
    %53 = vector.load %arg1[%c11, %c0_31] : memref<24x256xbf16, #tpu.memory_space<vmem>>, vector<1x256xbf16>
    %54 = arith.extf %53 : vector<1x256xbf16> to vector<1x256xf32>
    %55 = vector.broadcast %54 : vector<1x256xf32> to vector<8x256xf32>
    %56 = arith.mulf %55, %52 : vector<8x256xf32>
    %c0_32 = arith.constant 0 : index
    %c0_33 = arith.constant 0 : index
    %57 = vector.load %arg4[%c0_32, %c0_33] : memref<8x256xf32, #tpu.memory_space<vmem>>, vector<8x256xf32>
    %58 = arith.addf %57, %56 : vector<8x256xf32>
    %c0_34 = arith.constant 0 : index
    %c0_35 = arith.constant 0 : index
    %59 = vector.load %arg4[%c0_34, %c0_35] : memref<8x256xf32, #tpu.memory_space<vmem>>, vector<8x256xf32>
    tpu.vector_store %arg4[%c0_34, %c0_35], %58 {strides = array<i32>} : memref<8x256xf32, #tpu.memory_space<vmem>>, vector<8x256xf32>,
    %c32 = arith.constant 32 : index
    %c0_36 = arith.constant 0 : index
    %60 = vector.load %arg2[%c32, %c0_36] : memref<64x8xf32, #tpu.memory_space<vmem>>, vector<8x8xf32>
    %cst_37 = arith.constant dense<0.000000e+00> : vector<8x256xf32>
    %61 = tpu.matmul %60, %1, %cst_37 {dimension_numbers = #tpu.dot_dimension_numbers<[1], [0], [0], [1], [0, 0, 1, 1], [], []>} : vector<8x8xf32>, vector<8x256xf32>, vector<8x256xf32> -> vector<8x256xf32>
    %cst_38 = arith.constant 0.000000e+00 : f32
    %62 = vector.broadcast %cst_38 : f32 to vector<8x256xf32>
    %63 = arith.subf %62, %61 : vector<8x256xf32>
    %64 = math.exp %63 : vector<8x256xf32>
    %cst_39 = arith.constant 1.000000e+00 : f32
    %65 = vector.broadcast %cst_39 : f32 to vector<8x256xf32>
    %66 = arith.addf %65, %64 : vector<8x256xf32>
    %67 = tpu.reciprocal %66 {approx = true} : vector<8x256xf32> -> vector<8x256xf32>
    %c12 = arith.constant 12 : index
    %c0_40 = arith.constant 0 : index
    %68 = vector.load %arg1[%c12, %c0_40] : memref<24x256xbf16, #tpu.memory_space<vmem>>, vector<1x256xbf16>
    %69 = arith.extf %68 : vector<1x256xbf16> to vector<1x256xf32>
    %70 = vector.broadcast %69 : vector<1x256xf32> to vector<8x256xf32>
    %71 = arith.mulf %70, %67 : vector<8x256xf32>
    %c0_41 = arith.constant 0 : index
    %c0_42 = arith.constant 0 : index
    %72 = vector.load %arg4[%c0_41, %c0_42] : memref<8x256xf32, #tpu.memory_space<vmem>>, vector<8x256xf32>
    %73 = arith.addf %72, %71 : vector<8x256xf32>
    %c0_43 = arith.constant 0 : index
    %c0_44 = arith.constant 0 : index
    %74 = vector.load %arg4[%c0_43, %c0_44] : memref<8x256xf32, #tpu.memory_space<vmem>>, vector<8x256xf32>
    tpu.vector_store %arg4[%c0_43, %c0_44], %73 {strides = array<i32>} : memref<8x256xf32, #tpu.memory_space<vmem>>, vector<8x256xf32>,
    %c40 = arith.constant 40 : index
    %c0_45 = arith.constant 0 : index
    %75 = vector.load %arg2[%c40, %c0_45] : memref<64x8xf32, #tpu.memory_space<vmem>>, vector<8x8xf32>
    %cst_46 = arith.constant dense<0.000000e+00> : vector<8x256xf32>
    %76 = tpu.matmul %75, %1, %cst_46 {dimension_numbers = #tpu.dot_dimension_numbers<[1], [0], [0], [1], [0, 0, 1, 1], [], []>} : vector<8x8xf32>, vector<8x256xf32>, vector<8x256xf32> -> vector<8x256xf32>
    %cst_47 = arith.constant 0.000000e+00 : f32
    %77 = vector.broadcast %cst_47 : f32 to vector<8x256xf32>
    %78 = arith.subf %77, %76 : vector<8x256xf32>
    %79 = math.exp %78 : vector<8x256xf32>
    %cst_48 = arith.constant 1.000000e+00 : f32
    %80 = vector.broadcast %cst_48 : f32 to vector<8x256xf32>
    %81 = arith.addf %80, %79 : vector<8x256xf32>
    %82 = tpu.reciprocal %81 {approx = true} : vector<8x256xf32> -> vector<8x256xf32>
    %c13 = arith.constant 13 : index
    %c0_49 = arith.constant 0 : index
    %83 = vector.load %arg1[%c13, %c0_49] : memref<24x256xbf16, #tpu.memory_space<vmem>>, vector<1x256xbf16>
    %84 = arith.extf %83 : vector<1x256xbf16> to vector<1x256xf32>
    %85 = vector.broadcast %84 : vector<1x256xf32> to vector<8x256xf32>
    %86 = arith.mulf %85, %82 : vector<8x256xf32>
    %c0_50 = arith.constant 0 : index
    %c0_51 = arith.constant 0 : index
    %87 = vector.load %arg4[%c0_50, %c0_51] : memref<8x256xf32, #tpu.memory_space<vmem>>, vector<8x256xf32>
    %88 = arith.addf %87, %86 : vector<8x256xf32>
    %c0_52 = arith.constant 0 : index
    %c0_53 = arith.constant 0 : index
    %89 = vector.load %arg4[%c0_52, %c0_53] : memref<8x256xf32, #tpu.memory_space<vmem>>, vector<8x256xf32>
    tpu.vector_store %arg4[%c0_52, %c0_53], %88 {strides = array<i32>} : memref<8x256xf32, #tpu.memory_space<vmem>>, vector<8x256xf32>,
    %c48 = arith.constant 48 : index
    %c0_54 = arith.constant 0 : index
    %90 = vector.load %arg2[%c48, %c0_54] : memref<64x8xf32, #tpu.memory_space<vmem>>, vector<8x8xf32>
    %cst_55 = arith.constant dense<0.000000e+00> : vector<8x256xf32>
    %91 = tpu.matmul %90, %1, %cst_55 {dimension_numbers = #tpu.dot_dimension_numbers<[1], [0], [0], [1], [0, 0, 1, 1], [], []>} : vector<8x8xf32>, vector<8x256xf32>, vector<8x256xf32> -> vector<8x256xf32>
    %cst_56 = arith.constant 0.000000e+00 : f32
    %92 = vector.broadcast %cst_56 : f32 to vector<8x256xf32>
    %93 = arith.subf %92, %91 : vector<8x256xf32>
    %94 = math.exp %93 : vector<8x256xf32>
    %cst_57 = arith.constant 1.000000e+00 : f32
    %95 = vector.broadcast %cst_57 : f32 to vector<8x256xf32>
    %96 = arith.addf %95, %94 : vector<8x256xf32>
    %97 = tpu.reciprocal %96 {approx = true} : vector<8x256xf32> -> vector<8x256xf32>
    %c14 = arith.constant 14 : index
    %c0_58 = arith.constant 0 : index
    %98 = vector.load %arg1[%c14, %c0_58] : memref<24x256xbf16, #tpu.memory_space<vmem>>, vector<1x256xbf16>
    %99 = arith.extf %98 : vector<1x256xbf16> to vector<1x256xf32>
    %100 = vector.broadcast %99 : vector<1x256xf32> to vector<8x256xf32>
    %101 = arith.mulf %100, %97 : vector<8x256xf32>
    %c0_59 = arith.constant 0 : index
    %c0_60 = arith.constant 0 : index
    %102 = vector.load %arg4[%c0_59, %c0_60] : memref<8x256xf32, #tpu.memory_space<vmem>>, vector<8x256xf32>
    %103 = arith.addf %102, %101 : vector<8x256xf32>
    %c0_61 = arith.constant 0 : index
    %c0_62 = arith.constant 0 : index
    %104 = vector.load %arg4[%c0_61, %c0_62] : memref<8x256xf32, #tpu.memory_space<vmem>>, vector<8x256xf32>
    tpu.vector_store %arg4[%c0_61, %c0_62], %103 {strides = array<i32>} : memref<8x256xf32, #tpu.memory_space<vmem>>, vector<8x256xf32>,
    %c56 = arith.constant 56 : index
    %c0_63 = arith.constant 0 : index
    %105 = vector.load %arg2[%c56, %c0_63] : memref<64x8xf32, #tpu.memory_space<vmem>>, vector<8x8xf32>
    %cst_64 = arith.constant dense<0.000000e+00> : vector<8x256xf32>
    %106 = tpu.matmul %105, %1, %cst_64 {dimension_numbers = #tpu.dot_dimension_numbers<[1], [0], [0], [1], [0, 0, 1, 1], [], []>} : vector<8x8xf32>, vector<8x256xf32>, vector<8x256xf32> -> vector<8x256xf32>
    %cst_65 = arith.constant 0.000000e+00 : f32
    %107 = vector.broadcast %cst_65 : f32 to vector<8x256xf32>
    %108 = arith.subf %107, %106 : vector<8x256xf32>
    %109 = math.exp %108 : vector<8x256xf32>
    %cst_66 = arith.constant 1.000000e+00 : f32
    %110 = vector.broadcast %cst_66 : f32 to vector<8x256xf32>
    %111 = arith.addf %110, %109 : vector<8x256xf32>
    %112 = tpu.reciprocal %111 {approx = true} : vector<8x256xf32> -> vector<8x256xf32>
    %c15 = arith.constant 15 : index
    %c0_67 = arith.constant 0 : index
    %113 = vector.load %arg1[%c15, %c0_67] : memref<24x256xbf16, #tpu.memory_space<vmem>>, vector<1x256xbf16>
    %114 = arith.extf %113 : vector<1x256xbf16> to vector<1x256xf32>
    %115 = vector.broadcast %114 : vector<1x256xf32> to vector<8x256xf32>
    %116 = arith.mulf %115, %112 : vector<8x256xf32>
    %c0_68 = arith.constant 0 : index
    %c0_69 = arith.constant 0 : index
    %117 = vector.load %arg4[%c0_68, %c0_69] : memref<8x256xf32, #tpu.memory_space<vmem>>, vector<8x256xf32>
    %118 = arith.addf %117, %116 : vector<8x256xf32>
    %c0_70 = arith.constant 0 : index
    %c0_71 = arith.constant 0 : index
    %119 = vector.load %arg4[%c0_70, %c0_71] : memref<8x256xf32, #tpu.memory_space<vmem>>, vector<8x256xf32>
    tpu.vector_store %arg4[%c0_70, %c0_71], %118 {strides = array<i32>} : memref<8x256xf32, #tpu.memory_space<vmem>>, vector<8x256xf32>,
    %c0_72 = arith.constant 0 : index
    %c0_73 = arith.constant 0 : index
    %120 = vector.load %arg4[%c0_72, %c0_73] : memref<8x256xf32, #tpu.memory_space<vmem>>, vector<8x256xf32>
    %cst_74 = arith.constant 0.000000e+00 : f32
    %121 = vector.broadcast %cst_74 : f32 to vector<8x256xf32>
    %122 = arith.subf %121, %120 : vector<8x256xf32>
    %123 = math.exp %122 : vector<8x256xf32>
    %cst_75 = arith.constant 1.000000e+00 : f32
    %124 = vector.broadcast %cst_75 : f32 to vector<8x256xf32>
    %125 = arith.addf %124, %123 : vector<8x256xf32>
    %126 = tpu.reciprocal %125 {approx = true} : vector<8x256xf32> -> vector<8x256xf32>
    %c16_76 = arith.constant 16 : index
    %c0_77 = arith.constant 0 : index
    %127 = vector.load %arg1[%c16_76, %c0_77] : memref<24x256xbf16, #tpu.memory_space<vmem>>, vector<8x256xbf16>
    %128 = arith.extf %127 : vector<8x256xbf16> to vector<8x256xf32>
    %129 = arith.mulf %128, %126 : vector<8x256xf32>
    %cst_78 = arith.constant dense<0.000000e+00> : vector<256xf32>
    %130 = vector.multi_reduction <add>, %129, %cst_78 [0] : vector<8x256xf32> to vector<256xf32>
    %131 = vector.shape_cast %130 : vector<256xf32> to vector<1x256xf32>
    %c0_79 = arith.constant 0 : index
    %c0_80 = arith.constant 0 : index
    %132 = vector.load %arg3[%c0_79, %c0_80] : memref<1x256xf32, #tpu.memory_space<vmem>>, vector<1x256xf32>
    tpu.vector_store %arg3[%c0_79, %c0_80], %131 {strides = array<i32>} : memref<1x256xf32, #tpu.memory_space<vmem>>, vector<1x256xf32>,
    return
  }
  func.func @transform_0(%arg0: i32) -> (i32, i32) {
    %c0_i32 = arith.constant 0 : i32
    %c0_i32_0 = arith.constant 0 : i32
    return %c0_i32, %arg0 : i32, i32
  }
  func.func @transform_1(%arg0: i32) -> (i32, i32) {
    %c0_i32 = arith.constant 0 : i32
    %c0_i32_0 = arith.constant 0 : i32
    %c0_i32_1 = arith.constant 0 : i32
    return %c0_i32, %c0_i32_0 : i32, i32
  }
  func.func @transform_2(%arg0: i32) -> (i32, i32) {
    %c0_i32 = arith.constant 0 : i32
    %c0_i32_0 = arith.constant 0 : i32
    return %c0_i32, %arg0 : i32, i32
  }
}

</mosaic_0001>

<llo_original>
// kernel: tpu_custom_call.1
$region0: #{tpu_custom_call.1}
  #allocation0 [shape = 'u32[]', space=smem, size = 0x4, offset = 0x4, fixed_abs, tag = 'smem constant byte address 0x4 - core index']
  #allocation1 [shape = 'u32[144,128]{1,0:T(1,128)}', space=vmem, size = 0x12000, scoped, tag = 'internal scratch']
  #allocation2 [shape = 'f32[8,256]{1,0:T(8,128)}', space=vmem, size = 0x2000, scoped, tag = 'scratch operand']
  %s0 = inlined_call_operand.vmem [shape: bf16[24,768], index: 0, kind: input, shape index: {}]
  %s1 = inlined_call_operand.vmem [shape: f32[64,8], index: 1, kind: input, shape index: {}]
  %s2 = inlined_call_operand.hbm [shape: f32[1,768], index: 2, kind: output, shape index: {}]
  %s3 = sld [smem:[#allocation0]]
  $region79: #{tpu_custom_call.1} parent=0
    _
  %s5 = ssub.s32 1, %s3
  %s6 = scalar_select 0, %s5, %s3
  $region1: #{tpu_custom_call.1} parent=0
    #allocation3 [shape = 'u8[24576]{0}', space=vmem, size = 0x6000, scoped, tag = 'input window, operand 0']
    #allocation4 [shape = 'u8[2048]{0}', space=vmem, size = 0x800, scoped, tag = 'output window, operand 0']
    #allocation5 [shape = 's32[2]{0}', space=sflag, size = 0x8, scoped, tag = 'scoped memory for tpu_custom_call.1']
    %7 = vsyncpa [#allocation5], 0
    %s8 = scalar_lea.sflag [#allocation5], 1
    %9 = vsyncpa %s8, 0
    loop: start=0, step=1, limit=5
    $region2: #{tpu_custom_call.1} parent=1 // loop_pre_header
      _
    $region3: #{tpu_custom_call.1} parent=1 // loop_header
      %s11 = sphi 0, %s15
      %p12 = scmp.ge.s32.totalorder %s11, 5
      %s21 = sphi 0, %s23
      %s24 = sphi 0, %s21
      %s25 = sphi 0, %s24
      %s41 = sphi 0, %s25
      %s45 = sphi 0, %s45
      %s47 = sphi 0, %s45
      %s48 = sphi 0, %s47
      %s62 = sphi 0, %s48
      %s68 = sphi 0, %s70
      %s71 = sphi 0, %s68
      %s72 = sphi 0, %s71
      %s88 = sphi 0, %s72
    $region4: #{tpu_custom_call.1} parent=1 // loop_header_branch
      %14 = sbr.rel (%p12) target = $region8
    $region5: #{tpu_custom_call.1} parent=1 // loop_body
      %s16 = ssub.s32 %s11, 1
      %s17 = ssub.s32 %s11, 2
      %s18 = sadd.s32 %s11, 1
      %s19 = ssub.s32 %s11, %s18
      %p20 = scmp.eq.s32.totalorder %s19, 0
      %s22 = sadd.s32 %s21, 1
      %s23 = scalar_select %p20, %s21, %s22
      %p26 = pneg %p20
      %p27 = scmp.eq.s32.totalorder %s11, 2
      %p28 = por %p26, %p27
      %p29 = scmp.ne.s32.totalorder %s21, %s24
      %p30 = scmp.eq.s32.totalorder %s11, 0
      %p31 = por %p29, %p30
      %p32 = scmp.ne.s32.totalorder %s21, %s24
      %p33 = scmp.eq.s32.totalorder %s16, 2
      %p34 = por %p32, %p33
      %p35 = scmp.ne.s32.totalorder %s24, %s25
      %p36 = scmp.eq.s32.totalorder %s16, 0
      %p37 = por %p35, %p36
      %p38 = scmp.ne.s32.totalorder %s24, %s25
      %p39 = scmp.eq.s32.totalorder %s17, 2
      %p40 = por %p38, %p39
      %p42 = scmp.ne.s32.totalorder %s25, %s41
      %p43 = scmp.eq.s32.totalorder %s17, 0
      %p44 = por %p42, %p43
      %s46 = sadd.s32 %s45, 1
      %p49 = scmp.eq.s32.totalorder %s11, 2
      %p50 = scmp.ne.s32.totalorder %s45, %s47
      %p51 = scmp.eq.s32.totalorder %s11, 0
      %p52 = por %p50, %p51
      %p53 = scmp.ne.s32.totalorder %s45, %s47
      %p54 = scmp.eq.s32.totalorder %s16, 2
      %p55 = por %p53, %p54
      %p56 = scmp.ne.s32.totalorder %s47, %s48
      %p57 = scmp.eq.s32.totalorder %s16, 0
      %p58 = por %p56, %p57
      %p59 = scmp.ne.s32.totalorder %s47, %s48
      %p60 = scmp.eq.s32.totalorder %s17, 2
      %p61 = por %p59, %p60
      %p63 = scmp.ne.s32.totalorder %s48, %s62
      %p64 = scmp.eq.s32.totalorder %s17, 0
      %p65 = por %p63, %p64
      %s66 = ssub.s32 %s11, %s18
      %p67 = scmp.eq.s32.totalorder %s66, 0
      %s69 = sadd.s32 %s68, 1
      %s70 = scalar_select %p67, %s68, %s69
      %p73 = pneg %p67
      %p74 = scmp.eq.s32.totalorder %s11, 2
      %p75 = por %p73, %p74
      %p76 = scmp.ne.s32.totalorder %s68, %s71
      %p77 = scmp.eq.s32.totalorder %s11, 0
      %p78 = por %p76, %p77
      %p79 = scmp.ne.s32.totalorder %s68, %s71
      %p80 = scmp.eq.s32.totalorder %s16, 2
      %p81 = por %p79, %p80
      %p82 = scmp.ne.s32.totalorder %s71, %s72
      %p83 = scmp.eq.s32.totalorder %s16, 0
      %p84 = por %p82, %p83
      %p85 = scmp.ne.s32.totalorder %s71, %s72
      %p86 = scmp.eq.s32.totalorder %s17, 2
      %p87 = por %p85, %p86
      %p89 = scmp.ne.s32.totalorder %s72, %s88
      %p90 = scmp.eq.s32.totalorder %s17, 0
      %p91 = por %p89, %p90
      %p92 = scmp.le.s32.totalorder 1, %s11
      %p93 = scmp.lt.s32.totalorder %s11, 4
      %p94 = pnand %p92, %p93
      %p95 = pneg %p94
      // Predicated region
      $region9: #{tpu_custom_call.1} parent=5 // pred_check
        _
      $region10: #{tpu_custom_call.1} parent=5 // pred_check_branch
        %97 = sbr.rel (%p94) target = $region12
      $region11: #{tpu_custom_call.1} parent=5 // pred_region
        %s98 = ssub.s32 %s11, 1
        // Predicated region
        $region13: #{tpu_custom_call.1} parent=11 // pred_check
          %p99 = pneg %p58
        $region14: #{tpu_custom_call.1} parent=11 // pred_check_branch
          %101 = sbr.rel (%p99) target = $region16
        $region15: #{tpu_custom_call.1} parent=11 // pred_region
          _
        $region16: #{tpu_custom_call.1} parent=11 // pred_fallthru
          _
      $region12: #{tpu_custom_call.1} parent=5 // pred_fallthru
        _
      %p102 = scmp.lt.s32.totalorder %s11, 3
      // Predicated region
      $region17: #{tpu_custom_call.1} parent=5 // pred_check
        %p103 = pneg %p102
      $region18: #{tpu_custom_call.1} parent=5 // pred_check_branch
        %105 = sbr.rel (%p103) target = $region20
      $region19: #{tpu_custom_call.1} parent=5 // pred_region
        // Predicated region
        $region21: #{tpu_custom_call.1} parent=19 // pred_check
          %p106 = pneg %p31
        $region22: #{tpu_custom_call.1} parent=19 // pred_check_branch
          %108 = sbr.rel (%p106) target = $region24
        $region23: #{tpu_custom_call.1} parent=19 // pred_region
          %s109 = sand.u32 %s21, 1
          %s110 = sand.u32 %s21, 1
          %s111 = smul.addr %s110, 24
          %s112 = scalar_lea.vmem [#allocation3], %s111
          %s113 = smul.u32 2, %s11
          %s114 = smul.addr %s113, 4
          %s115 = scalar_lea.vmem %s0, %s114
          // Predicated region
          $region25: #{tpu_custom_call.1} parent=23 // pred_check
            _
          $region26: #{tpu_custom_call.1} parent=23 // pred_check_branch
            %117 = sbr.rel (0) target = $region28
          $region27: #{tpu_custom_call.1} parent=23 // pred_region
            // Predicated region
            $region29: #{tpu_custom_call.1} parent=27 // pred_check
              _
            $region30: #{tpu_custom_call.1} parent=27 // pred_check_branch
              %119 = sbr.rel (0) target = $region32
            $region31: #{tpu_custom_call.1} parent=27 // pred_region
              // Predicated region
              $region44: #{tpu_custom_call.1} parent=31 // pred_check
                _
              $region45: #{tpu_custom_call.1} parent=31 // pred_check_branch
                %138 = sbr.rel (0) target = $region47
              $region46: #{tpu_custom_call.1} parent=31 // pred_region
                loop: start=0, step=1, limit=1
                $region48: #{tpu_custom_call.1} parent=46 // loop_pre_header
                  _
                $region49: #{tpu_custom_call.1} parent=46 // loop_header
                  %s140 = sphi 0, %s144
                  %p141 = scmp.ge.s32.totalorder %s140, 1
                  %s145 = sphi %s115, %s115
                  %s146 = sphi %s112, %s112
                $region50: #{tpu_custom_call.1} parent=46 // loop_header_branch
                  %143 = sbr.rel (%p141) target = $region54
                $region51: #{tpu_custom_call.1} parent=46 // loop_body
                  %v147 = vld [vmem:[%s145] sm:$0xff]
                  %148 = vst [vmem:[%s146] sm:$0xff] %v147
                  %v149 = vld [vmem:[%s145 + $0x18] sm:$0xff]
                  %150 = vst [vmem:[%s146 + $0x8] sm:$0xff] %v149
                  %v151 = vld [vmem:[%s145 + $0x30] sm:$0xff]
                  %152 = vst [vmem:[%s146 + $0x10] sm:$0xff] %v151
                $region52: #{tpu_custom_call.1} parent=46 // loop_footer
                  %s144 = sadd.s32 1, %s140
                $region53: #{tpu_custom_call.1} parent=46 // loop_footer_branch
                  %139 = sbr.rel target = $region49
                $region54: #{tpu_custom_call.1} parent=46 // loop_exit
                  _
              $region47: #{tpu_custom_call.1} parent=31 // pred_fallthru
                _
              // Predicated region
              $region55: #{tpu_custom_call.1} parent=31 // pred_check
                _
              $region56: #{tpu_custom_call.1} parent=31 // pred_check_branch
                %154 = sbr.rel target = $region58
              $region57: #{tpu_custom_call.1} parent=31 // pred_region
                _
              $region58: #{tpu_custom_call.1} parent=31 // pred_fallthru
                _
            $region32: #{tpu_custom_call.1} parent=27 // pred_fallthru
              _
            // Predicated region
            $region33: #{tpu_custom_call.1} parent=27 // pred_check
              _
            $region34: #{tpu_custom_call.1} parent=27 // pred_check_branch
              %121 = sbr.rel target = $region36
            $region35: #{tpu_custom_call.1} parent=27 // pred_region
              loop: start=0, step=1, limit=1
              $region37: #{tpu_custom_call.1} parent=35 // loop_pre_header
                _
              $region38: #{tpu_custom_call.1} parent=35 // loop_header
                %s124 = sphi 0, %s128
                %p125 = scmp.ge.s32.totalorder %s124, 1
                %s129 = sphi %s115, %s115
                %s130 = sphi %s112, %s112
              $region39: #{tpu_custom_call.1} parent=35 // loop_header_branch
                %127 = sbr.rel (%p125) target = $region43
              $region40: #{tpu_custom_call.1} parent=35 // loop_body
                %v131 = vld [vmem:[%s129] sm:$0xff]
                %132 = vst [vmem:[%s130] sm:$0xff] %v131
                %v133 = vld [vmem:[%s129 + $0x18] sm:$0xff]
                %134 = vst [vmem:[%s130 + $0x8] sm:$0xff] %v133
                %v135 = vld [vmem:[%s129 + $0x30] sm:$0xff]
                %136 = vst [vmem:[%s130 + $0x10] sm:$0xff] %v135
              $region41: #{tpu_custom_call.1} parent=35 // loop_footer
                %s128 = sadd.s32 1, %s124
              $region42: #{tpu_custom_call.1} parent=35 // loop_footer_branch
                %123 = sbr.rel target = $region38
              $region43: #{tpu_custom_call.1} parent=35 // loop_exit
                _
            $region36: #{tpu_custom_call.1} parent=27 // pred_fallthru
              _
          $region28: #{tpu_custom_call.1} parent=23 // pred_fallthru
            _
          %155 = vnop
        $region24: #{tpu_custom_call.1} parent=19 // pred_fallthru
          _
      $region20: #{tpu_custom_call.1} parent=5 // pred_fallthru
        _
      %p156 = scmp.le.s32.totalorder 1, %s11
      %p157 = scmp.lt.s32.totalorder %s11, 4
      %p158 = pnand %p156, %p157
      %p159 = pneg %p158
      // Predicated region
      $region59: #{tpu_custom_call.1} parent=5 // pred_check
        _
      $region60: #{tpu_custom_call.1} parent=5 // pred_check_branch
        %161 = sbr.rel (%p158) target = $region62
      $region61: #{tpu_custom_call.1} parent=5 // pred_region
        %s162 = ssub.s32 %s11, 1
        %s163 = sand.u32 %s24, 1
        %s164 = sand.u32 %s24, 1
        %s165 = smul.addr %s164, 24
        %s166 = scalar_lea.vmem [#allocation3], %s165
        // Predicated region
        $region63: #{tpu_custom_call.1} parent=61 // pred_check
          %p167 = pneg %p37
        $region64: #{tpu_custom_call.1} parent=61 // pred_check_branch
          %169 = sbr.rel (%p167) target = $region66
        $region65: #{tpu_custom_call.1} parent=61 // pred_region
          _
        $region66: #{tpu_custom_call.1} parent=61 // pred_fallthru
          _
        %s170 = sand.u32 %s24, 1
        %s171 = sand.u32 %s24, 1
        %s172 = smul.addr %s171, 24
        %s173 = scalar_lea.vmem [#allocation3], %s172
        %p174 = pneg %p37
        %p175 = pneg %p34
        %p176 = pneg %p58
        %p177 = pneg %p55
        %p178 = pneg %p84
        %p179 = pneg %p81
        %s180 = sand.u32 %s71, 1
        %s181 = scalar_lea.sflag [#allocation5], %s180
        %s182 = sand.u32 %s71, 1
        %s183 = smul.addr %s182, 2
        %s184 = scalar_lea.vmem [#allocation4], %s183
        %s185 = smul.u32 2, %s16
        %s186 = smul.u32 2, %s16
        %v187 = vld [vmem:[%s166] sm:$0xff]
        %v188 = vunpack.c.l.bf16 %v187
        %v189 = vunpack.c.h.bf16 %v187
        %v190 = vld [vmem:[%s1] sm:$0xff]
        %vm191 = vcmask 64512
        %v193 = vsel %vm191, %v190, 0
        %195 = vmatprep.subr.mxu0 %v189
        %196 = vmatpush1.msra.mxu0 %v188
        %197 = vmatprep.subr.mxu0 0.0
        %198 = vmatpush1.msra.mxu0 0.0
        %199 = vmatprep.subr.mxu0 0.0
        %200 = vmatpush1.msra.mxu0 0.0
        %201 = vmatprep.subr.mxu0 0.0
        %202 = vmatpush1.msra.mxu0 0.0
        %203 = vmatprep.subr.mxu0 0.0
        %204 = vmatpush1.msra.mxu0 0.0
        %205 = vmatprep.subr.mxu0 0.0
        %206 = vmatpush1.msra.mxu0 0.0
        %207 = vmatprep.subr.mxu0 0.0
        %208 = vmatpush1.msra.mxu0 0.0
        %209 = vmatprep.subr.mxu0 0.0
        %210 = vmatpush1.msra.mxu0 0.0
        %211 = vmatprep.subr.mxu0 0.0
        %212 = vmatpush1.msra.mxu0 0.0
        %213 = vmatprep.subr.mxu0 0.0
        %214 = vmatpush1.msra.mxu0 0.0
        %215 = vmatprep.subr.mxu0 0.0
        %216 = vmatpush1.msra.mxu0 0.0
        %217 = vmatprep.subr.mxu0 0.0
        %218 = vmatpush1.msra.mxu0 0.0
        %219 = vmatprep.subr.mxu0 0.0
        %220 = vmatpush1.msra.mxu0 0.0
        %221 = vmatprep.subr.mxu0 0.0
        %222 = vmatpush1.msra.mxu0 0.0
        %223 = vmatprep.subr.mxu0 0.0
        %224 = vmatpush1.msra.mxu0 0.0
        %225 = vmatprep.subr.mxu0 0.0
        %226 = vmatpush1.msra.mxu0 0.0
        %227 = vmatprep.subr.mxu0 0.0
        %228 = vmatpush1.msra.mxu0 0.0
        %229 = vmatprep.subr.mxu0 0.0
        %230 = vmatpush1.msra.mxu0 0.0
        %231 = vmatprep.subr.mxu0 0.0
        %232 = vmatpush1.msra.mxu0 0.0
        %233 = vmatprep.subr.mxu0 0.0
        %234 = vmatpush1.msra.mxu0 0.0
        %235 = vmatprep.subr.mxu0 0.0
        %236 = vmatpush1.msra.mxu0 0.0
        %237 = vmatprep.subr.mxu0 0.0
        %238 = vmatpush1.msra.mxu0 0.0
        %239 = vmatprep.subr.mxu0 0.0
        %240 = vmatpush1.msra.mxu0 0.0
        %241 = vmatprep.subr.mxu0 0.0
        %242 = vmatpush1.msra.mxu0 0.0
        %243 = vmatprep.subr.mxu0 0.0
        %244 = vmatpush1.msra.mxu0 0.0
        %245 = vmatprep.subr.mxu0 0.0
        %246 = vmatpush1.msra.mxu0 0.0
        %247 = vmatprep.subr.mxu0 0.0
        %248 = vmatpush1.msra.mxu0 0.0
        %249 = vmatprep.subr.mxu0 0.0
        %250 = vmatpush1.msra.mxu0 0.0
        %251 = vmatprep.subr.mxu0 0.0
        %252 = vmatpush1.msra.mxu0 0.0
        %253 = vmatprep.subr.mxu0 0.0
        %254 = vmatpush1.msra.mxu0 0.0
        %255 = vmatprep.subr.mxu0 0.0
        %256 = vmatpush1.msra.mxu0 0.0
        %257 = vmatprep.subr.mxu0 0.0
        %258 = vmatpush1.msra.mxu0 0.0
        %259 = vmatprep.mubr.f32.mxu0 0.0
        %260 = vmatmul.mubr.f32.gmra.mrb[0].mxu0 %v193
        %v261 = vpop.f32.mrb[0].mxu0
        %v262 = vadd.f32 0.0, %v261
        %v263 = vpop.f32.mrb[0].mxu0
        %v264 = vadd.f32 0.0, %v263
        %265 = vdwg.mxu0
        %v266 = vsub.f32 0.0, %v262
        %v267 = vsub.f32 0.0, %v264
        %v268 = vmul.f32 %v266, 1.442695
        %v269 = vpow.pop %v268
        %v270 = vmul.f32 %v267, 1.442695
        %v271 = vpow.pop %v270
        %v272 = vadd.f32 %v269, 1.0
        %v273 = vadd.f32 %v271, 1.0
        %v274 = vrcp.pop %v272
        %v275 = vrcp.pop %v273
        %v276 = vld [vmem:[%s166 + $0x8] sm:$0x11]
        %v277 = vunpack.c.l.bf16 %v276
        %v278 = vunpack.c.h.bf16 %v276
        %v279 = vlaneseq
        %v280 = vshrl.u32 %v279, 7
        %v281 = vsub.s32 0, %v280
        %v282 = vrot.slane %v277, %v281
        %v283 = vlaneseq
        %v284 = vshrl.u32 %v283, 7
        %v285 = vsub.s32 0, %v284
        %v286 = vrot.slane %v278, %v285
        %v287 = vmul.f32 %v282, %v274
        %v288 = vmul.f32 %v286, %v275
        %289 = vst [vmem:[#allocation2] sm:$0xff] %v287
        %290 = vst [vmem:[#allocation2 + $0x8] sm:$0xff] %v288
        %v291 = vld [vmem:[%s1 + $0x8] sm:$0xff]
        %v293 = vsel %vm191, %v291, 0
        %295 = vmatprep.subr.mxu0 %v189
        %296 = vmatpush1.msra.mxu0 %v188
        %297 = vmatprep.subr.mxu0 0.0
        %298 = vmatpush1.msra.mxu0 0.0
        %299 = vmatprep.subr.mxu0 0.0
        %300 = vmatpush1.msra.mxu0 0.0
        %301 = vmatprep.subr.mxu0 0.0
        %302 = vmatpush1.msra.mxu0 0.0
        %303 = vmatprep.subr.mxu0 0.0
        %304 = vmatpush1.msra.mxu0 0.0
        %305 = vmatprep.subr.mxu0 0.0
        %306 = vmatpush1.msra.mxu0 0.0
        %307 = vmatprep.subr.mxu0 0.0
        %308 = vmatpush1.msra.mxu0 0.0
        %309 = vmatprep.subr.mxu0 0.0
        %310 = vmatpush1.msra.mxu0 0.0
        %311 = vmatprep.subr.mxu0 0.0
        %312 = vmatpush1.msra.mxu0 0.0
        %313 = vmatprep.subr.mxu0 0.0
        %314 = vmatpush1.msra.mxu0 0.0
        %315 = vmatprep.subr.mxu0 0.0
        %316 = vmatpush1.msra.mxu0 0.0
        %317 = vmatprep.subr.mxu0 0.0
        %318 = vmatpush1.msra.mxu0 0.0
        %319 = vmatprep.subr.mxu0 0.0
        %320 = vmatpush1.msra.mxu0 0.0
        %321 = vmatprep.subr.mxu0 0.0
        %322 = vmatpush1.msra.mxu0 0.0
        %323 = vmatprep.subr.mxu0 0.0
        %324 = vmatpush1.msra.mxu0 0.0
        %325 = vmatprep.subr.mxu0 0.0
        %326 = vmatpush1.msra.mxu0 0.0
        %327 = vmatprep.subr.mxu0 0.0
        %328 = vmatpush1.msra.mxu0 0.0
        %329 = vmatprep.subr.mxu0 0.0
        %330 = vmatpush1.msra.mxu0 0.0
        %331 = vmatprep.subr.mxu0 0.0
        %332 = vmatpush1.msra.mxu0 0.0
        %333 = vmatprep.subr.mxu0 0.0
        %334 = vmatpush1.msra.mxu0 0.0
        %335 = vmatprep.subr.mxu0 0.0
        %336 = vmatpush1.msra.mxu0 0.0
        %337 = vmatprep.subr.mxu0 0.0
        %338 = vmatpush1.msra.mxu0 0.0
        %339 = vmatprep.subr.mxu0 0.0
        %340 = vmatpush1.msra.mxu0 0.0
        %341 = vmatprep.subr.mxu0 0.0
        %342 = vmatpush1.msra.mxu0 0.0
        %343 = vmatprep.subr.mxu0 0.0
        %344 = vmatpush1.msra.mxu0 0.0
        %345 = vmatprep.subr.mxu0 0.0
        %346 = vmatpush1.msra.mxu0 0.0
        %347 = vmatprep.subr.mxu0 0.0
        %348 = vmatpush1.msra.mxu0 0.0
        %349 = vmatprep.subr.mxu0 0.0
        %350 = vmatpush1.msra.mxu0 0.0
        %351 = vmatprep.subr.mxu0 0.0
        %352 = vmatpush1.msra.mxu0 0.0
        %353 = vmatprep.subr.mxu0 0.0
        %354 = vmatpush1.msra.mxu0 0.0
        %355 = vmatprep.subr.mxu0 0.0
        %356 = vmatpush1.msra.mxu0 0.0
        %357 = vmatprep.subr.mxu0 0.0
        %358 = vmatpush1.msra.mxu0 0.0
        %359 = vmatprep.mubr.f32.mxu0 0.0
        %360 = vmatmul.mubr.f32.gmra.mrb[0].mxu0 %v293
        %v361 = vpop.f32.mrb[0].mxu0
        %v362 = vadd.f32 0.0, %v361
        %v363 = vpop.f32.mrb[0].mxu0
        %v364 = vadd.f32 0.0, %v363
        %365 = vdwg.mxu0
        %v366 = vsub.f32 0.0, %v362
        %v367 = vsub.f32 0.0, %v364
        %v368 = vmul.f32 %v366, 1.442695
        %v369 = vpow.pop %v368
        %v370 = vmul.f32 %v367, 1.442695
        %v371 = vpow.pop %v370
        %v372 = vadd.f32 %v369, 1.0
        %v373 = vadd.f32 %v371, 1.0
        %v374 = vrcp.pop %v372
        %v375 = vrcp.pop %v373
        %v376 = vld [vmem:[%s166 + $0x8] sm:$0x11]
        %v377 = vunpack.c.l.bf16 %v376
        %v378 = vunpack.c.h.bf16 %v376
        %v379 = vlaneseq
        %v380 = vshrl.u32 %v379, 7
        %v381 = vsub.s32 1, %v380
        %v382 = vrot.slane %v377, %v381
        %v383 = vlaneseq
        %v384 = vshrl.u32 %v383, 7
        %v385 = vsub.s32 1, %v384
        %v386 = vrot.slane %v378, %v385
        %v387 = vmul.f32 %v382, %v374
        %v388 = vmul.f32 %v386, %v375
        %v389 = vld [vmem:[#allocation2] sm:$0xff]
        %v390 = vld [vmem:[#allocation2 + $0x8] sm:$0xff]
        %v391 = vadd.f32 %v389, %v387
        %v392 = vadd.f32 %v390, %v388
        %393 = vst [vmem:[#allocation2] sm:$0xff] %v391
        %394 = vst [vmem:[#allocation2 + $0x8] sm:$0xff] %v392
        %v395 = vld [vmem:[%s1 + $0x10] sm:$0xff]
        %v397 = vsel %vm191, %v395, 0
        %399 = vmatprep.subr.mxu0 %v189
        %400 = vmatpush1.msra.mxu0 %v188
        %401 = vmatprep.subr.mxu0 0.0
        %402 = vmatpush1.msra.mxu0 0.0
        %403 = vmatprep.subr.mxu0 0.0
        %404 = vmatpush1.msra.mxu0 0.0
        %405 = vmatprep.subr.mxu0 0.0
        %406 = vmatpush1.msra.mxu0 0.0
        %407 = vmatprep.subr.mxu0 0.0
        %408 = vmatpush1.msra.mxu0 0.0
        %409 = vmatprep.subr.mxu0 0.0
        %410 = vmatpush1.msra.mxu0 0.0
        %411 = vmatprep.subr.mxu0 0.0
        %412 = vmatpush1.msra.mxu0 0.0
        %413 = vmatprep.subr.mxu0 0.0
        %414 = vmatpush1.msra.mxu0 0.0
        %415 = vmatprep.subr.mxu0 0.0
        %416 = vmatpush1.msra.mxu0 0.0
        %417 = vmatprep.subr.mxu0 0.0
        %418 = vmatpush1.msra.mxu0 0.0
        %419 = vmatprep.subr.mxu0 0.0
        %420 = vmatpush1.msra.mxu0 0.0
        %421 = vmatprep.subr.mxu0 0.0
        %422 = vmatpush1.msra.mxu0 0.0
        %423 = vmatprep.subr.mxu0 0.0
        %424 = vmatpush1.msra.mxu0 0.0
        %425 = vmatprep.subr.mxu0 0.0
        %426 = vmatpush1.msra.mxu0 0.0
        %427 = vmatprep.subr.mxu0 0.0
        %428 = vmatpush1.msra.mxu0 0.0
        %429 = vmatprep.subr.mxu0 0.0
        %430 = vmatpush1.msra.mxu0 0.0
        %431 = vmatprep.subr.mxu0 0.0
        %432 = vmatpush1.msra.mxu0 0.0
        %433 = vmatprep.subr.mxu0 0.0
        %434 = vmatpush1.msra.mxu0 0.0
        %435 = vmatprep.subr.mxu0 0.0
        %436 = vmatpush1.msra.mxu0 0.0
        %437 = vmatprep.subr.mxu0 0.0
        %438 = vmatpush1.msra.mxu0 0.0
        %439 = vmatprep.subr.mxu0 0.0
        %440 = vmatpush1.msra.mxu0 0.0
        %441 = vmatprep.subr.mxu0 0.0
        %442 = vmatpush1.msra.mxu0 0.0
        %443 = vmatprep.subr.mxu0 0.0
        %444 = vmatpush1.msra.mxu0 0.0
        %445 = vmatprep.subr.mxu0 0.0
        %446 = vmatpush1.msra.mxu0 0.0
        %447 = vmatprep.subr.mxu0 0.0
        %448 = vmatpush1.msra.mxu0 0.0
        %449 = vmatprep.subr.mxu0 0.0
        %450 = vmatpush1.msra.mxu0 0.0
        %451 = vmatprep.subr.mxu0 0.0
        %452 = vmatpush1.msra.mxu0 0.0
        %453 = vmatprep.subr.mxu0 0.0
        %454 = vmatpush1.msra.mxu0 0.0
        %455 = vmatprep.subr.mxu0 0.0
        %456 = vmatpush1.msra.mxu0 0.0
        %457 = vmatprep.subr.mxu0 0.0
        %458 = vmatpush1.msra.mxu0 0.0
        %459 = vmatprep.subr.mxu0 0.0
        %460 = vmatpush1.msra.mxu0 0.0
        %461 = vmatprep.subr.mxu0 0.0
        %462 = vmatpush1.msra.mxu0 0.0
        %463 = vmatprep.mubr.f32.mxu0 0.0
        %464 = vmatmul.mubr.f32.gmra.mrb[0].mxu0 %v397
        %v465 = vpop.f32.mrb[0].mxu0
        %v466 = vadd.f32 0.0, %v465
        %v467 = vpop.f32.mrb[0].mxu0
        %v468 = vadd.f32 0.0, %v467
        %469 = vdwg.mxu0
        %v470 = vsub.f32 0.0, %v466
        %v471 = vsub.f32 0.0, %v468
        %v472 = vmul.f32 %v470, 1.442695
        %v473 = vpow.pop %v472
        %v474 = vmul.f32 %v471, 1.442695
        %v475 = vpow.pop %v474
        %v476 = vadd.f32 %v473, 1.0
        %v477 = vadd.f32 %v475, 1.0
        %v478 = vrcp.pop %v476
        %v479 = vrcp.pop %v477
        %v480 = vld [vmem:[%s166 + $0x8] sm:$0x22]
        %v481 = vunpack.c.l.bf16 %v480
        %v482 = vunpack.c.h.bf16 %v480
        %v483 = vlaneseq
        %v484 = vshrl.u32 %v483, 7
        %v485 = vsub.s32 2, %v484
        %v486 = vrot.slane %v481, %v485
        %v487 = vlaneseq
        %v488 = vshrl.u32 %v487, 7
        %v489 = vsub.s32 2, %v488
        %v490 = vrot.slane %v482, %v489
        %v491 = vmul.f32 %v486, %v478
        %v492 = vmul.f32 %v490, %v479
        %v493 = vld [vmem:[#allocation2] sm:$0xff]
        %v494 = vld [vmem:[#allocation2 + $0x8] sm:$0xff]
        %v495 = vadd.f32 %v493, %v491
        %v496 = vadd.f32 %v494, %v492
        %497 = vst [vmem:[#allocation2] sm:$0xff] %v495
        %498 = vst [vmem:[#allocation2 + $0x8] sm:$0xff] %v496
        %v499 = vld [vmem:[%s1 + $0x18] sm:$0xff]
        %v501 = vsel %vm191, %v499, 0
        %503 = vmatprep.subr.mxu0 %v189
        %504 = vmatpush1.msra.mxu0 %v188
        %505 = vmatprep.subr.mxu0 0.0
        %506 = vmatpush1.msra.mxu0 0.0
        %507 = vmatprep.subr.mxu0 0.0
        %508 = vmatpush1.msra.mxu0 0.0
        %509 = vmatprep.subr.mxu0 0.0
        %510 = vmatpush1.msra.mxu0 0.0
        %511 = vmatprep.subr.mxu0 0.0
        %512 = vmatpush1.msra.mxu0 0.0
        %513 = vmatprep.subr.mxu0 0.0
        %514 = vmatpush1.msra.mxu0 0.0
        %515 = vmatprep.subr.mxu0 0.0
        %516 = vmatpush1.msra.mxu0 0.0
        %517 = vmatprep.subr.mxu0 0.0
        %518 = vmatpush1.msra.mxu0 0.0
        %519 = vmatprep.subr.mxu0 0.0
        %520 = vmatpush1.msra.mxu0 0.0
        %521 = vmatprep.subr.mxu0 0.0
        %522 = vmatpush1.msra.mxu0 0.0
        %523 = vmatprep.subr.mxu0 0.0
        %524 = vmatpush1.msra.mxu0 0.0
        %525 = vmatprep.subr.mxu0 0.0
        %526 = vmatpush1.msra.mxu0 0.0
        %527 = vmatprep.subr.mxu0 0.0
        %528 = vmatpush1.msra.mxu0 0.0
        %529 = vmatprep.subr.mxu0 0.0
        %530 = vmatpush1.msra.mxu0 0.0
        %531 = vmatprep.subr.mxu0 0.0
        %532 = vmatpush1.msra.mxu0 0.0
        %533 = vmatprep.subr.mxu0 0.0
        %534 = vmatpush1.msra.mxu0 0.0
        %535 = vmatprep.subr.mxu0 0.0
        %536 = vmatpush1.msra.mxu0 0.0
        %537 = vmatprep.subr.mxu0 0.0
        %538 = vmatpush1.msra.mxu0 0.0
        %539 = vmatprep.subr.mxu0 0.0
        %540 = vmatpush1.msra.mxu0 0.0
        %541 = vmatprep.subr.mxu0 0.0
        %542 = vmatpush1.msra.mxu0 0.0
        %543 = vmatprep.subr.mxu0 0.0
        %544 = vmatpush1.msra.mxu0 0.0
        %545 = vmatprep.subr.mxu0 0.0
        %546 = vmatpush1.msra.mxu0 0.0
        %547 = vmatprep.subr.mxu0 0.0
        %548 = vmatpush1.msra.mxu0 0.0
        %549 = vmatprep.subr.mxu0 0.0
        %550 = vmatpush1.msra.mxu0 0.0
        %551 = vmatprep.subr.mxu0 0.0
        %552 = vmatpush1.msra.mxu0 0.0
        %553 = vmatprep.subr.mxu0 0.0
        %554 = vmatpush1.msra.mxu0 0.0
        %555 = vmatprep.subr.mxu0 0.0
        %556 = vmatpush1.msra.mxu0 0.0
        %557 = vmatprep.subr.mxu0 0.0
        %558 = vmatpush1.msra.mxu0 0.0
        %559 = vmatprep.subr.mxu0 0.0
        %560 = vmatpush1.msra.mxu0 0.0
        %561 = vmatprep.subr.mxu0 0.0
        %562 = vmatpush1.msra.mxu0 0.0
        %563 = vmatprep.subr.mxu0 0.0
        %564 = vmatpush1.msra.mxu0 0.0
        %565 = vmatprep.subr.mxu0 0.0
        %566 = vmatpush1.msra.mxu0 0.0
        %567 = vmatprep.mubr.f32.mxu0 0.0
        %568 = vmatmul.mubr.f32.gmra.mrb[0].mxu0 %v501
        %v569 = vpop.f32.mrb[0].mxu0
        %v570 = vadd.f32 0.0, %v569
        %v571 = vpop.f32.mrb[0].mxu0
        %v572 = vadd.f32 0.0, %v571
        %573 = vdwg.mxu0
        %v574 = vsub.f32 0.0, %v570
        %v575 = vsub.f32 0.0, %v572
        %v576 = vmul.f32 %v574, 1.442695
        %v577 = vpow.pop %v576
        %v578 = vmul.f32 %v575, 1.442695
        %v579 = vpow.pop %v578
        %v580 = vadd.f32 %v577, 1.0
        %v581 = vadd.f32 %v579, 1.0
        %v582 = vrcp.pop %v580
        %v583 = vrcp.pop %v581
        %v584 = vld [vmem:[%s166 + $0x8] sm:$0x22]
        %v585 = vunpack.c.l.bf16 %v584
        %v586 = vunpack.c.h.bf16 %v584
        %v587 = vlaneseq
        %v588 = vshrl.u32 %v587, 7
        %v589 = vsub.s32 3, %v588
        %v590 = vrot.slane %v585, %v589
        %v591 = vlaneseq
        %v592 = vshrl.u32 %v591, 7
        %v593 = vsub.s32 3, %v592
        %v594 = vrot.slane %v586, %v593
        %v595 = vmul.f32 %v590, %v582
        %v596 = vmul.f32 %v594, %v583
        %v597 = vld [vmem:[#allocation2] sm:$0xff]
        %v598 = vld [vmem:[#allocation2 + $0x8] sm:$0xff]
        %v599 = vadd.f32 %v597, %v595
        %v600 = vadd.f32 %v598, %v596
        %601 = vst [vmem:[#allocation2] sm:$0xff] %v599
        %602 = vst [vmem:[#allocation2 + $0x8] sm:$0xff] %v600
        %v603 = vld [vmem:[%s1 + $0x20] sm:$0xff]
        %v605 = vsel %vm191, %v603, 0
        %607 = vmatprep.subr.mxu0 %v189
        %608 = vmatpush1.msra.mxu0 %v188
        %609 = vmatprep.subr.mxu0 0.0
        %610 = vmatpush1.msra.mxu0 0.0
        %611 = vmatprep.subr.mxu0 0.0
        %612 = vmatpush1.msra.mxu0 0.0
        %613 = vmatprep.subr.mxu0 0.0
        %614 = vmatpush1.msra.mxu0 0.0
        %615 = vmatprep.subr.mxu0 0.0
        %616 = vmatpush1.msra.mxu0 0.0
        %617 = vmatprep.subr.mxu0 0.0
        %618 = vmatpush1.msra.mxu0 0.0
        %619 = vmatprep.subr.mxu0 0.0
        %620 = vmatpush1.msra.mxu0 0.0
        %621 = vmatprep.subr.mxu0 0.0
        %622 = vmatpush1.msra.mxu0 0.0
        %623 = vmatprep.subr.mxu0 0.0
        %624 = vmatpush1.msra.mxu0 0.0
        %625 = vmatprep.subr.mxu0 0.0
        %626 = vmatpush1.msra.mxu0 0.0
        %627 = vmatprep.subr.mxu0 0.0
        %628 = vmatpush1.msra.mxu0 0.0
        %629 = vmatprep.subr.mxu0 0.0
        %630 = vmatpush1.msra.mxu0 0.0
        %631 = vmatprep.subr.mxu0 0.0
        %632 = vmatpush1.msra.mxu0 0.0
        %633 = vmatprep.subr.mxu0 0.0
        %634 = vmatpush1.msra.mxu0 0.0
        %635 = vmatprep.subr.mxu0 0.0
        %636 = vmatpush1.msra.mxu0 0.0
        %637 = vmatprep.subr.mxu0 0.0
        %638 = vmatpush1.msra.mxu0 0.0
        %639 = vmatprep.subr.mxu0 0.0
        %640 = vmatpush1.msra.mxu0 0.0
        %641 = vmatprep.subr.mxu0 0.0
        %642 = vmatpush1.msra.mxu0 0.0
        %643 = vmatprep.subr.mxu0 0.0
        %644 = vmatpush1.msra.mxu0 0.0
        %645 = vmatprep.subr.mxu0 0.0
        %646 = vmatpush1.msra.mxu0 0.0
        %647 = vmatprep.subr.mxu0 0.0
        %648 = vmatpush1.msra.mxu0 0.0
        %649 = vmatprep.subr.mxu0 0.0
        %650 = vmatpush1.msra.mxu0 0.0
        %651 = vmatprep.subr.mxu0 0.0
        %652 = vmatpush1.msra.mxu0 0.0
        %653 = vmatprep.subr.mxu0 0.0
        %654 = vmatpush1.msra.mxu0 0.0
        %655 = vmatprep.subr.mxu0 0.0
        %656 = vmatpush1.msra.mxu0 0.0
        %657 = vmatprep.subr.mxu0 0.0
        %658 = vmatpush1.msra.mxu0 0.0
        %659 = vmatprep.subr.mxu0 0.0
        %660 = vmatpush1.msra.mxu0 0.0
        %661 = vmatprep.subr.mxu0 0.0
        %662 = vmatpush1.msra.mxu0 0.0
        %663 = vmatprep.subr.mxu0 0.0
        %664 = vmatpush1.msra.mxu0 0.0
        %665 = vmatprep.subr.mxu0 0.0
        %666 = vmatpush1.msra.mxu0 0.0
        %667 = vmatprep.subr.mxu0 0.0
        %668 = vmatpush1.msra.mxu0 0.0
        %669 = vmatprep.subr.mxu0 0.0
        %670 = vmatpush1.msra.mxu0 0.0
        %671 = vmatprep.mubr.f32.mxu0 0.0
        %672 = vmatmul.mubr.f32.gmra.mrb[0].mxu0 %v605
        %v673 = vpop.f32.mrb[0].mxu0
        %v674 = vadd.f32 0.0, %v673
        %v675 = vpop.f32.mrb[0].mxu0
        %v676 = vadd.f32 0.0, %v675
        %677 = vdwg.mxu0
        %v678 = vsub.f32 0.0, %v674
        %v679 = vsub.f32 0.0, %v676
        %v680 = vmul.f32 %v678, 1.442695
        %v681 = vpow.pop %v680
        %v682 = vmul.f32 %v679, 1.442695
        %v683 = vpow.pop %v682
        %v684 = vadd.f32 %v681, 1.0
        %v685 = vadd.f32 %v683, 1.0
        %v686 = vrcp.pop %v684
        %v687 = vrcp.pop %v685
        %v688 = vld [vmem:[%s166 + $0x8] sm:$0x44]
        %v689 = vunpack.c.l.bf16 %v688
        %v690 = vunpack.c.h.bf16 %v688
        %v691 = vlaneseq
        %v692 = vshrl.u32 %v691, 7
        %v693 = vsub.s32 4, %v692
        %v694 = vrot.slane %v689, %v693
        %v695 = vlaneseq
        %v696 = vshrl.u32 %v695, 7
        %v697 = vsub.s32 4, %v696
        %v698 = vrot.slane %v690, %v697
        %v699 = vmul.f32 %v694, %v686
        %v700 = vmul.f32 %v698, %v687
        %v701 = vld [vmem:[#allocation2] sm:$0xff]
        %v702 = vld [vmem:[#allocation2 + $0x8] sm:$0xff]
        %v703 = vadd.f32 %v701, %v699
        %v704 = vadd.f32 %v702, %v700
        %705 = vst [vmem:[#allocation2] sm:$0xff] %v703
        %706 = vst [vmem:[#allocation2 + $0x8] sm:$0xff] %v704
        %v707 = vld [vmem:[%s1 + $0x28] sm:$0xff]
        %v709 = vsel %vm191, %v707, 0
        %711 = vmatprep.subr.mxu0 %v189
        %712 = vmatpush1.msra.mxu0 %v188
        %713 = vmatprep.subr.mxu0 0.0
        %714 = vmatpush1.msra.mxu0 0.0
        %715 = vmatprep.subr.mxu0 0.0
        %716 = vmatpush1.msra.mxu0 0.0
        %717 = vmatprep.subr.mxu0 0.0
        %718 = vmatpush1.msra.mxu0 0.0
        %719 = vmatprep.subr.mxu0 0.0
        %720 = vmatpush1.msra.mxu0 0.0
        %721 = vmatprep.subr.mxu0 0.0
        %722 = vmatpush1.msra.mxu0 0.0
        %723 = vmatprep.subr.mxu0 0.0
        %724 = vmatpush1.msra.mxu0 0.0
        %725 = vmatprep.subr.mxu0 0.0
        %726 = vmatpush1.msra.mxu0 0.0
        %727 = vmatprep.subr.mxu0 0.0
        %728 = vmatpush1.msra.mxu0 0.0
        %729 = vmatprep.subr.mxu0 0.0
        %730 = vmatpush1.msra.mxu0 0.0
        %731 = vmatprep.subr.mxu0 0.0
        %732 = vmatpush1.msra.mxu0 0.0
        %733 = vmatprep.subr.mxu0 0.0
        %734 = vmatpush1.msra.mxu0 0.0
        %735 = vmatprep.subr.mxu0 0.0
        %736 = vmatpush1.msra.mxu0 0.0
        %737 = vmatprep.subr.mxu0 0.0
        %738 = vmatpush1.msra.mxu0 0.0
        %739 = vmatprep.subr.mxu0 0.0
        %740 = vmatpush1.msra.mxu0 0.0
        %741 = vmatprep.subr.mxu0 0.0
        %742 = vmatpush1.msra.mxu0 0.0
        %743 = vmatprep.subr.mxu0 0.0
        %744 = vmatpush1.msra.mxu0 0.0
        %745 = vmatprep.subr.mxu0 0.0
        %746 = vmatpush1.msra.mxu0 0.0
        %747 = vmatprep.subr.mxu0 0.0
        %748 = vmatpush1.msra.mxu0 0.0
        %749 = vmatprep.subr.mxu0 0.0
        %750 = vmatpush1.msra.mxu0 0.0
        %751 = vmatprep.subr.mxu0 0.0
        %752 = vmatpush1.msra.mxu0 0.0
        %753 = vmatprep.subr.mxu0 0.0
        %754 = vmatpush1.msra.mxu0 0.0
        %755 = vmatprep.subr.mxu0 0.0
        %756 = vmatpush1.msra.mxu0 0.0
        %757 = vmatprep.subr.mxu0 0.0
        %758 = vmatpush1.msra.mxu0 0.0
        %759 = vmatprep.subr.mxu0 0.0
        %760 = vmatpush1.msra.mxu0 0.0
        %761 = vmatprep.subr.mxu0 0.0
        %762 = vmatpush1.msra.mxu0 0.0
        %763 = vmatprep.subr.mxu0 0.0
        %764 = vmatpush1.msra.mxu0 0.0
        %765 = vmatprep.subr.mxu0 0.0
        %766 = vmatpush1.msra.mxu0 0.0
        %767 = vmatprep.subr.mxu0 0.0
        %768 = vmatpush1.msra.mxu0 0.0
        %769 = vmatprep.subr.mxu0 0.0
        %770 = vmatpush1.msra.mxu0 0.0
        %771 = vmatprep.subr.mxu0 0.0
        %772 = vmatpush1.msra.mxu0 0.0
        %773 = vmatprep.subr.mxu0 0.0
        %774 = vmatpush1.msra.mxu0 0.0
        %775 = vmatprep.mubr.f32.mxu0 0.0
        %776 = vmatmul.mubr.f32.gmra.mrb[0].mxu0 %v709
        %v777 = vpop.f32.mrb[0].mxu0
        %v778 = vadd.f32 0.0, %v777
        %v779 = vpop.f32.mrb[0].mxu0
        %v780 = vadd.f32 0.0, %v779
        %781 = vdwg.mxu0
        %v782 = vsub.f32 0.0, %v778
        %v783 = vsub.f32 0.0, %v780
        %v784 = vmul.f32 %v782, 1.442695
        %v785 = vpow.pop %v784
        %v786 = vmul.f32 %v783, 1.442695
        %v787 = vpow.pop %v786
        %v788 = vadd.f32 %v785, 1.0
        %v789 = vadd.f32 %v787, 1.0
        %v790 = vrcp.pop %v788
        %v791 = vrcp.pop %v789
        %v792 = vld [vmem:[%s166 + $0x8] sm:$0x44]
        %v793 = vunpack.c.l.bf16 %v792
        %v794 = vunpack.c.h.bf16 %v792
        %v795 = vlaneseq
        %v796 = vshrl.u32 %v795, 7
        %v797 = vsub.s32 5, %v796
        %v798 = vrot.slane %v793, %v797
        %v799 = vlaneseq
        %v800 = vshrl.u32 %v799, 7
        %v801 = vsub.s32 5, %v800
        %v802 = vrot.slane %v794, %v801
        %v803 = vmul.f32 %v798, %v790
        %v804 = vmul.f32 %v802, %v791
        %v805 = vld [vmem:[#allocation2] sm:$0xff]
        %v806 = vld [vmem:[#allocation2 + $0x8] sm:$0xff]
        %v807 = vadd.f32 %v805, %v803
        %v808 = vadd.f32 %v806, %v804
        %809 = vst [vmem:[#allocation2] sm:$0xff] %v807
        %810 = vst [vmem:[#allocation2 + $0x8] sm:$0xff] %v808
        %v811 = vld [vmem:[%s1 + $0x30] sm:$0xff]
        %v813 = vsel %vm191, %v811, 0
        %815 = vmatprep.subr.mxu0 %v189
        %816 = vmatpush1.msra.mxu0 %v188
        %817 = vmatprep.subr.mxu0 0.0
        %818 = vmatpush1.msra.mxu0 0.0
        %819 = vmatprep.subr.mxu0 0.0
        %820 = vmatpush1.msra.mxu0 0.0
        %821 = vmatprep.subr.mxu0 0.0
        %822 = vmatpush1.msra.mxu0 0.0
        %823 = vmatprep.subr.mxu0 0.0
        %824 = vmatpush1.msra.mxu0 0.0
        %825 = vmatprep.subr.mxu0 0.0
        %826 = vmatpush1.msra.mxu0 0.0
        %827 = vmatprep.subr.mxu0 0.0
        %828 = vmatpush1.msra.mxu0 0.0
        %829 = vmatprep.subr.mxu0 0.0
        %830 = vmatpush1.msra.mxu0 0.0
        %831 = vmatprep.subr.mxu0 0.0
        %832 = vmatpush1.msra.mxu0 0.0
        %833 = vmatprep.subr.mxu0 0.0
        %834 = vmatpush1.msra.mxu0 0.0
        %835 = vmatprep.subr.mxu0 0.0
        %836 = vmatpush1.msra.mxu0 0.0
        %837 = vmatprep.subr.mxu0 0.0
        %838 = vmatpush1.msra.mxu0 0.0
        %839 = vmatprep.subr.mxu0 0.0
        %840 = vmatpush1.msra.mxu0 0.0
        %841 = vmatprep.subr.mxu0 0.0
        %842 = vmatpush1.msra.mxu0 0.0
        %843 = vmatprep.subr.mxu0 0.0
        %844 = vmatpush1.msra.mxu0 0.0
        %845 = vmatprep.subr.mxu0 0.0
        %846 = vmatpush1.msra.mxu0 0.0
        %847 = vmatprep.subr.mxu0 0.0
        %848 = vmatpush1.msra.mxu0 0.0
        %849 = vmatprep.subr.mxu0 0.0
        %850 = vmatpush1.msra.mxu0 0.0
        %851 = vmatprep.subr.mxu0 0.0
        %852 = vmatpush1.msra.mxu0 0.0
        %853 = vmatprep.subr.mxu0 0.0
        %854 = vmatpush1.msra.mxu0 0.0
        %855 = vmatprep.subr.mxu0 0.0
        %856 = vmatpush1.msra.mxu0 0.0
        %857 = vmatprep.subr.mxu0 0.0
        %858 = vmatpush1.msra.mxu0 0.0
        %859 = vmatprep.subr.mxu0 0.0
        %860 = vmatpush1.msra.mxu0 0.0
        %861 = vmatprep.subr.mxu0 0.0
        %862 = vmatpush1.msra.mxu0 0.0
        %863 = vmatprep.subr.mxu0 0.0
        %864 = vmatpush1.msra.mxu0 0.0
        %865 = vmatprep.subr.mxu0 0.0
        %866 = vmatpush1.msra.mxu0 0.0
        %867 = vmatprep.subr.mxu0 0.0
        %868 = vmatpush1.msra.mxu0 0.0
        %869 = vmatprep.subr.mxu0 0.0
        %870 = vmatpush1.msra.mxu0 0.0
        %871 = vmatprep.subr.mxu0 0.0
        %872 = vmatpush1.msra.mxu0 0.0
        %873 = vmatprep.subr.mxu0 0.0
        %874 = vmatpush1.msra.mxu0 0.0
        %875 = vmatprep.subr.mxu0 0.0
        %876 = vmatpush1.msra.mxu0 0.0
        %877 = vmatprep.subr.mxu0 0.0
        %878 = vmatpush1.msra.mxu0 0.0
        %879 = vmatprep.mubr.f32.mxu0 0.0
        %880 = vmatmul.mubr.f32.gmra.mrb[0].mxu0 %v813
        %v881 = vpop.f32.mrb[0].mxu0
        %v882 = vadd.f32 0.0, %v881
        %v883 = vpop.f32.mrb[0].mxu0
        %v884 = vadd.f32 0.0, %v883
        %885 = vdwg.mxu0
        %v886 = vsub.f32 0.0, %v882
        %v887 = vsub.f32 0.0, %v884
        %v888 = vmul.f32 %v886, 1.442695
        %v889 = vpow.pop %v888
        %v890 = vmul.f32 %v887, 1.442695
        %v891 = vpow.pop %v890
        %v892 = vadd.f32 %v889, 1.0
        %v893 = vadd.f32 %v891, 1.0
        %v894 = vrcp.pop %v892
        %v895 = vrcp.pop %v893
        %v896 = vld [vmem:[%s166 + $0x8] sm:$0x88]
        %v897 = vunpack.c.l.bf16 %v896
        %v898 = vunpack.c.h.bf16 %v896
        %v899 = vlaneseq
        %v900 = vshrl.u32 %v899, 7
        %v901 = vsub.s32 6, %v900
        %v902 = vrot.slane %v897, %v901
        %v903 = vlaneseq
        %v904 = vshrl.u32 %v903, 7
        %v905 = vsub.s32 6, %v904
        %v906 = vrot.slane %v898, %v905
        %v907 = vmul.f32 %v902, %v894
        %v908 = vmul.f32 %v906, %v895
        %v909 = vld [vmem:[#allocation2] sm:$0xff]
        %v910 = vld [vmem:[#allocation2 + $0x8] sm:$0xff]
        %v911 = vadd.f32 %v909, %v907
        %v912 = vadd.f32 %v910, %v908
        %913 = vst [vmem:[#allocation2] sm:$0xff] %v911
        %914 = vst [vmem:[#allocation2 + $0x8] sm:$0xff] %v912
        %v915 = vld [vmem:[%s1 + $0x38] sm:$0xff]
        %v917 = vsel %vm191, %v915, 0
        %919 = vmatprep.subr.mxu0 %v189
        %920 = vmatpush1.msra.mxu0 %v188
        %921 = vmatprep.subr.mxu0 0.0
        %922 = vmatpush1.msra.mxu0 0.0
        %923 = vmatprep.subr.mxu0 0.0
        %924 = vmatpush1.msra.mxu0 0.0
        %925 = vmatprep.subr.mxu0 0.0
        %926 = vmatpush1.msra.mxu0 0.0
        %927 = vmatprep.subr.mxu0 0.0
        %928 = vmatpush1.msra.mxu0 0.0
        %929 = vmatprep.subr.mxu0 0.0
        %930 = vmatpush1.msra.mxu0 0.0
        %931 = vmatprep.subr.mxu0 0.0
        %932 = vmatpush1.msra.mxu0 0.0
        %933 = vmatprep.subr.mxu0 0.0
        %934 = vmatpush1.msra.mxu0 0.0
        %935 = vmatprep.subr.mxu0 0.0
        %936 = vmatpush1.msra.mxu0 0.0
        %937 = vmatprep.subr.mxu0 0.0
        %938 = vmatpush1.msra.mxu0 0.0
        %939 = vmatprep.subr.mxu0 0.0
        %940 = vmatpush1.msra.mxu0 0.0
        %941 = vmatprep.subr.mxu0 0.0
        %942 = vmatpush1.msra.mxu0 0.0
        %943 = vmatprep.subr.mxu0 0.0
        %944 = vmatpush1.msra.mxu0 0.0
        %945 = vmatprep.subr.mxu0 0.0
        %946 = vmatpush1.msra.mxu0 0.0
        %947 = vmatprep.subr.mxu0 0.0
        %948 = vmatpush1.msra.mxu0 0.0
        %949 = vmatprep.subr.mxu0 0.0
        %950 = vmatpush1.msra.mxu0 0.0
        %951 = vmatprep.subr.mxu0 0.0
        %952 = vmatpush1.msra.mxu0 0.0
        %953 = vmatprep.subr.mxu0 0.0
        %954 = vmatpush1.msra.mxu0 0.0
        %955 = vmatprep.subr.mxu0 0.0
        %956 = vmatpush1.msra.mxu0 0.0
        %957 = vmatprep.subr.mxu0 0.0
        %958 = vmatpush1.msra.mxu0 0.0
        %959 = vmatprep.subr.mxu0 0.0
        %960 = vmatpush1.msra.mxu0 0.0
        %961 = vmatprep.subr.mxu0 0.0
        %962 = vmatpush1.msra.mxu0 0.0
        %963 = vmatprep.subr.mxu0 0.0
        %964 = vmatpush1.msra.mxu0 0.0
        %965 = vmatprep.subr.mxu0 0.0
        %966 = vmatpush1.msra.mxu0 0.0
        %967 = vmatprep.subr.mxu0 0.0
        %968 = vmatpush1.msra.mxu0 0.0
        %969 = vmatprep.subr.mxu0 0.0
        %970 = vmatpush1.msra.mxu0 0.0
        %971 = vmatprep.subr.mxu0 0.0
        %972 = vmatpush1.msra.mxu0 0.0
        %973 = vmatprep.subr.mxu0 0.0
        %974 = vmatpush1.msra.mxu0 0.0
        %975 = vmatprep.subr.mxu0 0.0
        %976 = vmatpush1.msra.mxu0 0.0
        %977 = vmatprep.subr.mxu0 0.0
        %978 = vmatpush1.msra.mxu0 0.0
        %979 = vmatprep.subr.mxu0 0.0
        %980 = vmatpush1.msra.mxu0 0.0
        %981 = vmatprep.subr.mxu0 0.0
        %982 = vmatpush1.msra.mxu0 0.0
        %983 = vmatprep.mubr.f32.mxu0 0.0
        %984 = vmatmul.mubr.f32.gmra.mrb[0].mxu0 %v917
        %v985 = vpop.f32.mrb[0].mxu0
        %v986 = vadd.f32 0.0, %v985
        %v987 = vpop.f32.mrb[0].mxu0
        %v988 = vadd.f32 0.0, %v987
        %989 = vdwg.mxu0
        %v990 = vsub.f32 0.0, %v986
        %v991 = vsub.f32 0.0, %v988
        %v992 = vmul.f32 %v990, 1.442695
        %v993 = vpow.pop %v992
        %v994 = vmul.f32 %v991, 1.442695
        %v995 = vpow.pop %v994
        %v996 = vadd.f32 %v993, 1.0
        %v997 = vadd.f32 %v995, 1.0
        %v998 = vrcp.pop %v996
        %v999 = vrcp.pop %v997
        %v1000 = vld [vmem:[%s166 + $0x8] sm:$0x88]
        %v1001 = vunpack.c.l.bf16 %v1000
        %v1002 = vunpack.c.h.bf16 %v1000
        %v1003 = vlaneseq
        %v1004 = vshrl.u32 %v1003, 7
        %v1005 = vsub.s32 7, %v1004
        %v1006 = vrot.slane %v1001, %v1005
        %v1007 = vlaneseq
        %v1008 = vshrl.u32 %v1007, 7
        %v1009 = vsub.s32 7, %v1008
        %v1010 = vrot.slane %v1002, %v1009
        %v1011 = vmul.f32 %v1006, %v998
        %v1012 = vmul.f32 %v1010, %v999
        %v1013 = vld [vmem:[#allocation2] sm:$0xff]
        %v1014 = vld [vmem:[#allocation2 + $0x8] sm:$0xff]
        %v1015 = vadd.f32 %v1013, %v1011
        %v1016 = vadd.f32 %v1014, %v1012
        %1017 = vst [vmem:[#allocation2] sm:$0xff] %v1015
        %1018 = vst [vmem:[#allocation2 + $0x8] sm:$0xff] %v1016
        %v1019 = vld [vmem:[#allocation2] sm:$0xff]
        %v1020 = vld [vmem:[#allocation2 + $0x8] sm:$0xff]
        %v1021 = vsub.f32 0.0, %v1019
        %v1022 = vsub.f32 0.0, %v1020
        %v1023 = vmul.f32 %v1021, 1.442695
        %v1024 = vpow.pop %v1023
        %v1025 = vmul.f32 %v1022, 1.442695
        %v1026 = vpow.pop %v1025
        %v1027 = vadd.f32 %v1024, 1.0
        %v1028 = vadd.f32 %v1026, 1.0
        %v1029 = vrcp.pop %v1027
        %v1030 = vrcp.pop %v1028
        %v1031 = vld [vmem:[%s166 + $0x10] sm:$0xff]
        %v1032 = vunpack.c.l.bf16 %v1031
        %v1033 = vunpack.c.h.bf16 %v1031
        %v1034 = vmul.f32 %v1032, %v1029
        %v1035 = vmul.f32 %v1033, %v1030
        %v1036 = vrot.slane %v1034, 4
        %v1037 = vadd.f32 %v1034, %v1036
        %v1038 = vrot.slane %v1037, 2
        %v1039 = vadd.f32 %v1037, %v1038
        %v1040 = vrot.slane %v1039, 1
        %v1041 = vadd.f32 %v1039, %v1040
        %v1042 = vrot.slane %v1035, 4
        %v1043 = vadd.f32 %v1035, %v1042
        %v1044 = vrot.slane %v1043, 2
        %v1045 = vadd.f32 %v1043, %v1044
        %v1046 = vrot.slane %v1045, 1
        %v1047 = vadd.f32 %v1045, %v1046
        %v1050 = vcombine.low %v1041, %v1047
        %v1052 = vunpack.c.l.s4 1966171168
        %v1053 = vunpack.c.0.s8 %v1052
        %v1054 = vlaneseq
        %v1055 = vshrl.u32 %v1054, 7
        %v1056 = vsub.s32 %v1053, %v1055
        %v1057 = vrot.slane %v1050, %v1056
        %v1059 = vunpack.c.l.s4 1966171168
        %v1060 = vunpack.c.0.s8 %v1059
        %v1061 = vlaneseq
        %v1062 = vshrl.u32 %v1061, 7
        %v1063 = vsub.s32 %v1060, %v1062
        %v1064 = vrot.slane %v1057, %v1063
        %v1066 = vlaneseq
        %vm1067 = vcmp.ge.s32.totalorder %v1066, 0
        %vm1068 = vcmp.lt.s32.totalorder %v1066, 256
        %vm1069 = vmand %vm1067, %vm1068
        %1070 = vst.msk [vmem:[%s184] sm:$0x3] %vm1069, %v1064
        %s1071 = sand.u32 %s71, 1
        %s1072 = scalar_lea.sflag [#allocation5], %s1071
        %s1073 = sand.u32 %s71, 1
        %s1074 = smul.addr %s1073, 2
        %s1075 = scalar_lea.vmem [#allocation4], %s1074
        // Predicated region
        $region67: #{tpu_custom_call.1} parent=61 // pred_check
          %p1076 = pneg %p81
        $region68: #{tpu_custom_call.1} parent=61 // pred_check_branch
          %1078 = sbr.rel (%p1076) target = $region70
        $region69: #{tpu_custom_call.1} parent=61 // pred_region
          %s1079 = smul.u32 2, %s16
          %s1081 = ssub.s32 32, 32
          %1082 = vsyncadd %s1072, %s1081
          %s1083 = smul.addr %s1079, 16
          %s1084 = scalar_lea.hbm %s2, %s1083
          %s1086 = sshll.u32 %s1075, 4
          %s1087 = int_to_ptr.vmem [resolvable:$true] %s1086
          %1089 = dma.vmem_to_hbm [thread:$0]  %s1087, 32, %s1084, %s1072
        $region70: #{tpu_custom_call.1} parent=61 // pred_fallthru
          _
      $region62: #{tpu_custom_call.1} parent=5 // pred_fallthru
        _
      %p1090 = scmp.le.s32.totalorder 2, %s11
      // Predicated region
      $region71: #{tpu_custom_call.1} parent=5 // pred_check
        %p1091 = pneg %p1090
      $region72: #{tpu_custom_call.1} parent=5 // pred_check_branch
        %1093 = sbr.rel (%p1091) target = $region74
      $region73: #{tpu_custom_call.1} parent=5 // pred_region
        %s1094 = ssub.s32 %s11, 2
        // Predicated region
        $region75: #{tpu_custom_call.1} parent=73 // pred_check
          %p1095 = pneg %p87
        $region76: #{tpu_custom_call.1} parent=73 // pred_check_branch
          %1097 = sbr.rel (%p1095) target = $region78
        $region77: #{tpu_custom_call.1} parent=73 // pred_region
          %s1098 = sand.u32 %s72, 1
          %s1099 = scalar_lea.sflag [#allocation5], %s1098
          %s1100 = sand.u32 %s72, 1
          %s1101 = smul.addr %s1100, 2
          %s1102 = scalar_lea.vmem [#allocation4], %s1101
          %1103 = dma.done %s1099, 32
        $region78: #{tpu_custom_call.1} parent=73 // pred_fallthru
          _
      $region74: #{tpu_custom_call.1} parent=5 // pred_fallthru
        _
    $region6: #{tpu_custom_call.1} parent=1 // loop_footer
      %s15 = sadd.s32 1, %s11
    $region7: #{tpu_custom_call.1} parent=1 // loop_footer_branch
      %10 = sbr.rel target = $region3
    $region8: #{tpu_custom_call.1} parent=1 // loop_exit
      _
    %1104 = vsyncpa [#allocation5], 1
    %s1105 = scalar_lea.sflag [#allocation5], 1
    %1106 = vsyncpa %s1105, 1

</llo_original>
